<compile_context>
chip_gen: v6e
topology: v6e:2x2x1
jax: 0.10.0
libtpu: 0.0.40
codegen_flags: <defaults>
</compile_context>

<pallas_src>
import functools

import jax
import jax.numpy as jnp
from jax.experimental import pallas as pl
from jax.experimental.pallas import tpu as pltpu


OBS_DIM = 20
HID1, HID2, HID3 = 256, 128, 64
OUT_DIM = 3
OUT_PAD = 128          # lane-dense logits head: w4 padded (64, 3) -> (64, 128)
NEG_SLOPE = 0.01       # PyTorch LeakyReLU default
NEG_PAD = -1e30        # baked into padded b4 lanes; stays finite in f32


def _leaky_relu(x):
    # max(x, 0.01*x) == LeakyReLU(0.01) for slope in (0, 1]; 2 VALU ops/elem.
    return jnp.maximum(x, NEG_SLOPE * x)


def _round_up(n, m):
    return ((n + m - 1) // m) * m


def actor_kernel(x_ref, w1_ref, w2_ref, w3_ref, w4_ref, bias_ref, out_ref):
    # Bias slab (8, 256) f32:
    #   row 0: b1[256]
    #   row 1: b2[128] + zeros
    #   row 2: b3[64]  + zeros
    #   row 3: b4 (lanes [0,3)) with -1e30 in padded logit lanes [3,128)
    #   row 4: selector = 1.0 at lane OUT_DIM (where logsumexp is packed)
    b1 = bias_ref[0:1, :HID1]
    b2 = bias_ref[1:2, :HID2]
    b3 = bias_ref[2:3, :HID3]
    b4 = bias_ref[3:4, :OUT_PAD]
    sel = bias_ref[4:5, :OUT_PAD]

    # Layers 1-3: bf16 MXU operands, f32 accumulation; activation math in f32.
    x = x_ref[...].astype(jnp.bfloat16)
    h = jnp.dot(x, w1_ref[...], preferred_element_type=jnp.float32)
    h = _leaky_relu(h + b1)
    h = jnp.dot(h.astype(jnp.bfloat16), w2_ref[...],
                preferred_element_type=jnp.float32)
    h = _leaky_relu(h + b2)
    h = jnp.dot(h.astype(jnp.bfloat16), w3_ref[...],
                preferred_element_type=jnp.float32)
    h = _leaky_relu(h + b3)

    # Final (64 -> 3, padded to 128 lanes) layer kept fully in f32: tiny cost,
    # keeps log-prob accuracy limited only by the upstream bf16 layers.
    # Padded lanes get 0 @ w4_pad + (-1e30) = -1e30, so no explicit mask needed.
    logits = jnp.dot(h, w4_ref[...],
                     preferred_element_type=jnp.float32) + b4    # (TB, OUT_PAD)

    # log-softmax over the 128 lanes; padded lanes contribute exp(-1e30-m)=0.
    m = jnp.max(logits, axis=-1, keepdims=True)
    lse = m + jnp.log(jnp.sum(jnp.exp(logits - m), axis=-1, keepdims=True))
    logp = logits - lse

    # Single unmasked (TB, 128) store: log-probs in lanes [0,3), lse in lane 3.
    out_ref[...] = jnp.where(sel != 0.0, lse, logp)


def pack_params(params):
    """Pack f32 PyTorch-convention params into kernel inputs:
    - w1..w3 -> bf16 [in, out]
    - w4     -> f32  [64, 128] (real outputs in cols [0,3), zeros elsewhere)
    - biases + pad-mask + lse-selector -> one (8, 256) f32 slab."""
    w1, b1, w2, b2, w3, b3, w4, b4 = params
    w4p = jnp.zeros((HID3, OUT_PAD), jnp.float32).at[:, :OUT_DIM].set(w4)
    bias = jnp.zeros((8, HID1), jnp.float32)
    bias = bias.at[0, :HID1].set(b1.reshape(-1))
    bias = bias.at[1, :HID2].set(b2.reshape(-1))
    bias = bias.at[2, :HID3].set(b3.reshape(-1))
    # Row 3: -1e30 in every padded logit lane, real b4 in lanes [0, OUT_DIM).
    bias = bias.at[3, :OUT_PAD].set(jnp.float32(NEG_PAD))
    bias = bias.at[3, :OUT_DIM].set(b4.reshape(-1))
    # Row 4: selector marking the lane that carries logsumexp in the output.
    bias = bias.at[4, OUT_DIM].set(1.0)
    return (w1.astype(jnp.bfloat16), w2.astype(jnp.bfloat16),
            w3.astype(jnp.bfloat16), w4p, bias)


@functools.partial(jax.jit, static_argnames=("tb",))
def discrete_actor_forward(x, packed, tb=512):
    """x: (B, OBS_DIM) float32. Returns (logits, log_probs), each (B, OUT_DIM)."""
    B = x.shape[0]
    w1, w2, w3, w4p, bias = packed

    # Batch tile: multiple of 8 (f32 sublane). Aim for >= 2 grid steps so the
    # "parallel" batch axis can shard across both v7x TensorCores; cap at tb
    # (default 512 — v5e is writeback-bound, bigger tiles don't help there;
    # on v6e pass tb=1024/2048 for large B to amortize per-step overhead).
    TB = max(8, min(tb, _round_up(pl.cdiv(B, 2), 8)))
    grid = (pl.cdiv(B, TB),)

    flops = 2 * B * (OBS_DIM * HID1 + HID1 * HID2 + HID2 * HID3 + HID3 * OUT_PAD)
    bytes_accessed = (x.size * 4                                   # input
                      + 2 * (w1.size + w2.size + w3.size)          # bf16 weights
                      + w4p.size * 4 + bias.size * 4               # f32 w4 + biases
                      + B * OUT_PAD * 4)                           # single output slab
    transcendentals = B * (OUT_PAD + 1)                            # exp + log per row

    out = pl.pallas_call(
        actor_kernel,
        out_shape=jax.ShapeDtypeStruct((B, OUT_PAD), jnp.float32),
        grid=grid,
        in_specs=[
            pl.BlockSpec((TB, OBS_DIM), lambda i: (i, 0)),     # x: tiled over batch
            pl.BlockSpec((OBS_DIM, HID1), lambda i: (0, 0)),   # weights: resident
            pl.BlockSpec((HID1, HID2), lambda i: (0, 0)),
            pl.BlockSpec((HID2, HID3), lambda i: (0, 0)),
            pl.BlockSpec((HID3, OUT_PAD), lambda i: (0, 0)),
            pl.BlockSpec((8, HID1), lambda i: (0, 0)),         # biases + selector
        ],
        out_specs=pl.BlockSpec((TB, OUT_PAD), lambda i: (i, 0)),
        compiler_params=pltpu.CompilerParams(
            dimension_semantics=("parallel",)),                # megacore on v7x
        cost_estimate=pl.CostEstimate(
            flops=flops,
            transcendentals=transcendentals,
            bytes_accessed=bytes_accessed),
    )(x, w1, w2, w3, w4p, bias)

    # Unpack inside the same jit so XLA fuses the slices + add (no second full
    # HBM pass over the slab). lse rides in lane OUT_DIM of the packed output.
    log_probs = out[:, :OUT_DIM]
    lse = out[:, OUT_DIM:OUT_DIM + 1]
    logits = log_probs + lse
    return logits, log_probs


def init_params(key):
    """PyTorch Linear default init (U[-1/sqrt(fan_in), +1/sqrt(fan_in)]).
    Weights stored as [in_features, out_features]; biases as [1, out_features]."""
    dims = [(OBS_DIM, HID1), (HID1, HID2), (HID2, HID3), (HID3, OUT_DIM)]
    params = []
    for fan_in, fan_out in dims:
        key, kw, kb = jax.random.split(key, 3)
        bound = 1.0 / jnp.sqrt(jnp.float32(fan_in))
        w = jax.random.uniform(kw, (fan_in, fan_out), jnp.float32, -bound, bound)
        b = jax.random.uniform(kb, (1, fan_out), jnp.float32, -bound, bound)
        params.extend([w, b])
    return tuple(params)


def reference_forward(x, params):
    w1, b1, w2, b2, w3, b3, w4, b4 = params
    h = _leaky_relu(x @ w1 + b1)
    h = _leaky_relu(h @ w2 + b2)
    h = _leaky_relu(h @ w3 + b3)
    logits = h @ w4 + b4
    return logits, jax.nn.log_softmax(logits, axis=-1)


if __name__ == "__main__":
    key = jax.random.PRNGKey(0)
    key, kx = jax.random.split(key)
    batch = 64                      # small smoke test; TB=32 -> 2 grid steps
    x = jax.random.normal(kx, (batch, OBS_DIM), jnp.float32)
    params = init_params(key)
    packed = pack_params(params)

    logits, log_probs = discrete_actor_forward(x, packed)
    jax.block_until_ready((logits, log_probs))

    ref_logits, ref_log_probs = reference_forward(x, params)
    # Tolerance loosened vs. pure-f32 reference because layers 1-3 use bf16 operands.
    assert jnp.allclose(logits, ref_logits, atol=2e-2, rtol=2e-2)
    assert jnp.allclose(log_probs, ref_log_probs, atol=2e-2, rtol=2e-2)
    # Log-probs must be a valid distribution (what Categorical(logits=...) stores).
    assert jnp.allclose(jnp.sum(jnp.exp(log_probs), axis=-1), 1.0, atol=1e-3)

    print("KERNEL_OK")
</pallas_src>

<mosaic_0001>
module attributes {stable_mosaic.version = 11 : i64} {
  func.func @actor_kernel(%arg0: i32, %arg1: memref<32x20xf32, #tpu.memory_space<vmem>>, %arg2: memref<20x256xbf16, #tpu.memory_space<vmem>>, %arg3: memref<256x128xbf16, #tpu.memory_space<vmem>>, %arg4: memref<128x64xbf16, #tpu.memory_space<vmem>>, %arg5: memref<64x128xf32, #tpu.memory_space<vmem>>, %arg6: memref<8x256xf32, #tpu.memory_space<vmem>>, %arg7: memref<32x128xf32, #tpu.memory_space<vmem>>) attributes {dimension_semantics = [#tpu.dimension_semantics<parallel>], iteration_bounds = array<i64: 2>, scalar_prefetch = 0 : i64, scratch_operands = 0 : i64, tpu.core_type = #tpu.core_type<tc>, window_params = [{transform_indices = @transform_0, window_bounds = array<i64: 32, 20>}, {pipeline_mode = #tpu.pipeline_mode<synchronous>, transform_indices = @transform_1, window_bounds = array<i64: 20, 256>}, {pipeline_mode = #tpu.pipeline_mode<synchronous>, transform_indices = @transform_2, window_bounds = array<i64: 256, 128>}, {pipeline_mode = #tpu.pipeline_mode<synchronous>, transform_indices = @transform_3, window_bounds = array<i64: 128, 64>}, {pipeline_mode = #tpu.pipeline_mode<synchronous>, transform_indices = @transform_4, window_bounds = array<i64: 64, 128>}, {pipeline_mode = #tpu.pipeline_mode<synchronous>, transform_indices = @transform_5, window_bounds = array<i64: 8, 256>}, {transform_indices = @transform_6, window_bounds = array<i64: 32, 128>}]} {
    %c0 = arith.constant 0 : index
    %c0_0 = arith.constant 0 : index
    %0 = vector.load %arg6[%c0, %c0_0] : memref<8x256xf32, #tpu.memory_space<vmem>>, vector<1x256xf32>
    %c1 = arith.constant 1 : index
    %c0_1 = arith.constant 0 : index
    %1 = vector.load %arg6[%c1, %c0_1] : memref<8x256xf32, #tpu.memory_space<vmem>>, vector<1x128xf32>
    %c2 = arith.constant 2 : index
    %c0_2 = arith.constant 0 : index
    %2 = vector.load %arg6[%c2, %c0_2] : memref<8x256xf32, #tpu.memory_space<vmem>>, vector<1x64xf32>
    %c3 = arith.constant 3 : index
    %c0_3 = arith.constant 0 : index
    %3 = vector.load %arg6[%c3, %c0_3] : memref<8x256xf32, #tpu.memory_space<vmem>>, vector<1x128xf32>
    %c4 = arith.constant 4 : index
    %c0_4 = arith.constant 0 : index
    %4 = vector.load %arg6[%c4, %c0_4] : memref<8x256xf32, #tpu.memory_space<vmem>>, vector<1x128xf32>
    %c0_5 = arith.constant 0 : index
    %c0_6 = arith.constant 0 : index
    %5 = vector.load %arg1[%c0_5, %c0_6] : memref<32x20xf32, #tpu.memory_space<vmem>>, vector<32x20xf32>
    %6 = arith.truncf %5 : vector<32x20xf32> to vector<32x20xbf16>
    %c0_7 = arith.constant 0 : index
    %c0_8 = arith.constant 0 : index
    %7 = vector.load %arg2[%c0_7, %c0_8] : memref<20x256xbf16, #tpu.memory_space<vmem>>, vector<20x256xbf16>
    %cst = arith.constant dense<0.000000e+00> : vector<32x256xf32>
    %8 = tpu.matmul %6, %7, %cst {dimension_numbers = #tpu.dot_dimension_numbers<[1], [0], [0], [1], [0, 0, 1, 1], [], []>} : vector<32x20xbf16>, vector<20x256xbf16>, vector<32x256xf32> -> vector<32x256xf32>
    %9 = vector.broadcast %0 : vector<1x256xf32> to vector<32x256xf32>
    %10 = arith.addf %8, %9 : vector<32x256xf32>
    %cst_9 = arith.constant 0.00999999977 : f32
    %11 = vector.broadcast %cst_9 : f32 to vector<32x256xf32>
    %12 = arith.mulf %11, %10 : vector<32x256xf32>
    %13 = arith.maximumf %10, %12 : vector<32x256xf32>
    %14 = arith.truncf %13 : vector<32x256xf32> to vector<32x256xbf16>
    %c0_10 = arith.constant 0 : index
    %c0_11 = arith.constant 0 : index
    %15 = vector.load %arg3[%c0_10, %c0_11] : memref<256x128xbf16, #tpu.memory_space<vmem>>, vector<256x128xbf16>
    %cst_12 = arith.constant dense<0.000000e+00> : vector<32x128xf32>
    %16 = tpu.matmul %14, %15, %cst_12 {dimension_numbers = #tpu.dot_dimension_numbers<[1], [0], [0], [1], [0, 0, 1, 1], [], []>} : vector<32x256xbf16>, vector<256x128xbf16>, vector<32x128xf32> -> vector<32x128xf32>
    %17 = vector.broadcast %1 : vector<1x128xf32> to vector<32x128xf32>
    %18 = arith.addf %16, %17 : vector<32x128xf32>
    %cst_13 = arith.constant 0.00999999977 : f32
    %19 = vector.broadcast %cst_13 : f32 to vector<32x128xf32>
    %20 = arith.mulf %19, %18 : vector<32x128xf32>
    %21 = arith.maximumf %18, %20 : vector<32x128xf32>
    %22 = arith.truncf %21 : vector<32x128xf32> to vector<32x128xbf16>
    %c0_14 = arith.constant 0 : index
    %c0_15 = arith.constant 0 : index
    %23 = vector.load %arg4[%c0_14, %c0_15] : memref<128x64xbf16, #tpu.memory_space<vmem>>, vector<128x64xbf16>
    %cst_16 = arith.constant dense<0.000000e+00> : vector<32x64xf32>
    %24 = tpu.matmul %22, %23, %cst_16 {dimension_numbers = #tpu.dot_dimension_numbers<[1], [0], [0], [1], [0, 0, 1, 1], [], []>} : vector<32x128xbf16>, vector<128x64xbf16>, vector<32x64xf32> -> vector<32x64xf32>
    %25 = vector.broadcast %2 : vector<1x64xf32> to vector<32x64xf32>
    %26 = arith.addf %24, %25 : vector<32x64xf32>
    %cst_17 = arith.constant 0.00999999977 : f32
    %27 = vector.broadcast %cst_17 : f32 to vector<32x64xf32>
    %28 = arith.mulf %27, %26 : vector<32x64xf32>
    %29 = arith.maximumf %26, %28 : vector<32x64xf32>
    %c0_18 = arith.constant 0 : index
    %c0_19 = arith.constant 0 : index
    %30 = vector.load %arg5[%c0_18, %c0_19] : memref<64x128xf32, #tpu.memory_space<vmem>>, vector<64x128xf32>
    %cst_20 = arith.constant dense<0.000000e+00> : vector<32x128xf32>
    %31 = tpu.matmul %29, %30, %cst_20 {dimension_numbers = #tpu.dot_dimension_numbers<[1], [0], [0], [1], [0, 0, 1, 1], [], []>} : vector<32x64xf32>, vector<64x128xf32>, vector<32x128xf32> -> vector<32x128xf32>
    %32 = vector.broadcast %3 : vector<1x128xf32> to vector<32x128xf32>
    %33 = arith.addf %31, %32 : vector<32x128xf32>
    %cst_21 = arith.constant dense<0xFF800000> : vector<32xf32>
    %34 = vector.multi_reduction <maximumf>, %33, %cst_21 [1] : vector<32x128xf32> to vector<32xf32>
    %35 = vector.shape_cast %34 : vector<32xf32> to vector<32x1xf32>
    %36 = vector.broadcast %35 : vector<32x1xf32> to vector<32x128xf32>
    %37 = arith.subf %33, %36 : vector<32x128xf32>
    %38 = math.exp %37 : vector<32x128xf32>
    %cst_22 = arith.constant dense<0.000000e+00> : vector<32xf32>
    %39 = vector.multi_reduction <add>, %38, %cst_22 [1] : vector<32x128xf32> to vector<32xf32>
    %40 = vector.shape_cast %39 : vector<32xf32> to vector<32x1xf32>
    %41 = math.log %40 : vector<32x1xf32>
    %42 = arith.addf %35, %41 : vector<32x1xf32>
    %43 = vector.broadcast %42 : vector<32x1xf32> to vector<32x128xf32>
    %44 = arith.subf %33, %43 : vector<32x128xf32>
    %cst_23 = arith.constant 0.000000e+00 : f32
    %45 = vector.broadcast %cst_23 : f32 to vector<1x128xf32>
    %46 = arith.cmpf one, %4, %45 : vector<1x128xf32>
    %47 = vector.shape_cast %46 : vector<1x128xi1> to vector<1x128xi1>
    %48 = vector.broadcast %47 : vector<1x128xi1> to vector<32x128xi1>
    %49 = vector.shape_cast %42 : vector<32x1xf32> to vector<32x1xf32>
    %50 = vector.broadcast %49 : vector<32x1xf32> to vector<32x128xf32>
    %51 = arith.select %48, %50, %44 : vector<32x128xi1>, vector<32x128xf32>
    %c0_24 = arith.constant 0 : index
    %c0_25 = arith.constant 0 : index
    %52 = vector.load %arg7[%c0_24, %c0_25] : memref<32x128xf32, #tpu.memory_space<vmem>>, vector<32x128xf32>
    tpu.vector_store %arg7[%c0_24, %c0_25], %51 {strides = array<i32>} : memref<32x128xf32, #tpu.memory_space<vmem>>, vector<32x128xf32>,
    return
  }
  func.func @transform_0(%arg0: i32) -> (i32, i32) {
    %c0_i32 = arith.constant 0 : i32
    %c0_i32_0 = arith.constant 0 : i32
    return %arg0, %c0_i32 : i32, i32
  }
  func.func @transform_1(%arg0: i32) -> (i32, i32) {
    %c0_i32 = arith.constant 0 : i32
    %c0_i32_0 = arith.constant 0 : i32
    %c0_i32_1 = arith.constant 0 : i32
    return %c0_i32, %c0_i32_0 : i32, i32
  }
  func.func @transform_2(%arg0: i32) -> (i32, i32) {
    %c0_i32 = arith.constant 0 : i32
    %c0_i32_0 = arith.constant 0 : i32
    %c0_i32_1 = arith.constant 0 : i32
    return %c0_i32, %c0_i32_0 : i32, i32
  }
  func.func @transform_3(%arg0: i32) -> (i32, i32) {
    %c0_i32 = arith.constant 0 : i32
    %c0_i32_0 = arith.constant 0 : i32
    %c0_i32_1 = arith.constant 0 : i32
    return %c0_i32, %c0_i32_0 : i32, i32
  }
  func.func @transform_4(%arg0: i32) -> (i32, i32) {
    %c0_i32 = arith.constant 0 : i32
    %c0_i32_0 = arith.constant 0 : i32
    %c0_i32_1 = arith.constant 0 : i32
    return %c0_i32, %c0_i32_0 : i32, i32
  }
  func.func @transform_5(%arg0: i32) -> (i32, i32) {
    %c0_i32 = arith.constant 0 : i32
    %c0_i32_0 = arith.constant 0 : i32
    %c0_i32_1 = arith.constant 0 : i32
    return %c0_i32, %c0_i32_0 : i32, i32
  }
  func.func @transform_6(%arg0: i32) -> (i32, i32) {
    %c0_i32 = arith.constant 0 : i32
    %c0_i32_0 = arith.constant 0 : i32
    return %arg0, %c0_i32 : i32, i32
  }
}

</mosaic_0001>

<llo_original>
// kernel: discrete_actor_forward.1
$region0: #{discrete_actor_forward.1}
  #allocation0 [shape = 'u32[]', space=smem, size = 0x4, offset = 0x4, fixed_abs, tag = 'smem constant byte address 0x4 - core index']
  #allocation1 [shape = 'u32[144,128]{1,0:T(1,128)}', space=vmem, size = 0x12000, scoped, tag = 'internal scratch']
  %s0 = inlined_call_operand.vmem [shape: f32[64,20], index: 0, kind: input, shape index: {}]
  %s1 = inlined_call_operand.vmem [shape: bf16[20,256], index: 1, kind: input, shape index: {}]
  %s2 = inlined_call_operand.vmem [shape: bf16[256,128], index: 2, kind: input, shape index: {}]
  %s3 = inlined_call_operand.vmem [shape: bf16[128,64], index: 3, kind: input, shape index: {}]
  %s4 = inlined_call_operand.hbm [shape: f32[64,128], index: 4, kind: input, shape index: {}]
  %s5 = inlined_call_operand.hbm [shape: f32[8,256], index: 5, kind: input, shape index: {}]
  %s6 = inlined_call_operand.vmem [shape: f32[64,128], index: 6, kind: output, shape index: {}]
  %s7 = sld [smem:[#allocation0]]
  $region65: #{discrete_actor_forward.1} parent=0
    _
  %s9 = ssub.s32 1, %s7
  %s10 = scalar_select 0, %s9, %s7
  $region1: #{discrete_actor_forward.1} parent=0
    #allocation2 [shape = 'u8[32768]{0}', space=vmem, size = 0x8000, scoped, tag = 'input window, operand 4, single buffered']
    #allocation3 [shape = 's32[2]{0}', space=sflag, size = 0x8, scoped, tag = 'scoped memory for discrete_actor_forward.1']
    #allocation4 [shape = 'u8[8192]{0}', space=vmem, size = 0x2000, scoped, tag = 'input window, operand 5, single buffered']
    #allocation5 [shape = 's32[1]{0}', space=sflag, size = 0x4, scoped, tag = 'scoped memory for discrete_actor_forward.1']
    %11 = vsyncpa [#allocation3], 0
    %12 = vsyncpa [#allocation5], 0
    loop: start=0, step=1, limit=4
    $region2: #{discrete_actor_forward.1} parent=1 // loop_pre_header
      _
    $region3: #{discrete_actor_forward.1} parent=1 // loop_header
      %s14 = sphi 0, %s18
      %p15 = scmp.ge.s32.totalorder %s14, 4
      %s24 = sphi 0, %s26
      %s27 = sphi 0, %s24
      %s28 = sphi 0, %s27
      %s44 = sphi 0, %s28
      %s48 = sphi 0, %s48
      %s50 = sphi 0, %s48
      %s51 = sphi 0, %s50
      %s65 = sphi 0, %s51
      %s69 = sphi 0, %s69
      %s71 = sphi 0, %s69
      %s72 = sphi 0, %s71
      %s86 = sphi 0, %s72
      %s90 = sphi 0, %s90
      %s92 = sphi 0, %s90
      %s93 = sphi 0, %s92
      %s107 = sphi 0, %s93
      %s111 = sphi 0, %s111
      %s113 = sphi 0, %s111
      %s114 = sphi 0, %s113
      %s128 = sphi 0, %s114
      %s132 = sphi 0, %s132
      %s134 = sphi 0, %s132
      %s135 = sphi 0, %s134
      %s149 = sphi 0, %s135
      %s155 = sphi 0, %s157
      %s158 = sphi 0, %s155
      %s159 = sphi 0, %s158
      %s175 = sphi 0, %s159
    $region4: #{discrete_actor_forward.1} parent=1 // loop_header_branch
      %17 = sbr.rel (%p15) target = $region8
    $region5: #{discrete_actor_forward.1} parent=1 // loop_body
      %s19 = ssub.s32 %s14, 1
      %s20 = ssub.s32 %s14, 2
      %s21 = sadd.s32 %s14, 1
      %s22 = ssub.s32 %s14, %s21
      %p23 = scmp.eq.s32.totalorder %s22, 0
      %s25 = sadd.s32 %s24, 1
      %s26 = scalar_select %p23, %s24, %s25
      %p29 = pneg %p23
      %p30 = scmp.eq.s32.totalorder %s14, 1
      %p31 = por %p29, %p30
      %p32 = scmp.ne.s32.totalorder %s24, %s27
      %p33 = scmp.eq.s32.totalorder %s14, 0
      %p34 = por %p32, %p33
      %p35 = scmp.ne.s32.totalorder %s24, %s27
      %p36 = scmp.eq.s32.totalorder %s19, 1
      %p37 = por %p35, %p36
      %p38 = scmp.ne.s32.totalorder %s27, %s28
      %p39 = scmp.eq.s32.totalorder %s19, 0
      %p40 = por %p38, %p39
      %p41 = scmp.ne.s32.totalorder %s27, %s28
      %p42 = scmp.eq.s32.totalorder %s20, 1
      %p43 = por %p41, %p42
      %p45 = scmp.ne.s32.totalorder %s28, %s44
      %p46 = scmp.eq.s32.totalorder %s20, 0
      %p47 = por %p45, %p46
      %s49 = sadd.s32 %s48, 1
      %p52 = scmp.eq.s32.totalorder %s14, 1
      %p53 = scmp.ne.s32.totalorder %s48, %s50
      %p54 = scmp.eq.s32.totalorder %s14, 0
      %p55 = por %p53, %p54
      %p56 = scmp.ne.s32.totalorder %s48, %s50
      %p57 = scmp.eq.s32.totalorder %s19, 1
      %p58 = por %p56, %p57
      %p59 = scmp.ne.s32.totalorder %s50, %s51
      %p60 = scmp.eq.s32.totalorder %s19, 0
      %p61 = por %p59, %p60
      %p62 = scmp.ne.s32.totalorder %s50, %s51
      %p63 = scmp.eq.s32.totalorder %s20, 1
      %p64 = por %p62, %p63
      %p66 = scmp.ne.s32.totalorder %s51, %s65
      %p67 = scmp.eq.s32.totalorder %s20, 0
      %p68 = por %p66, %p67
      %s70 = sadd.s32 %s69, 1
      %p73 = scmp.eq.s32.totalorder %s14, 1
      %p74 = scmp.ne.s32.totalorder %s69, %s71
      %p75 = scmp.eq.s32.totalorder %s14, 0
      %p76 = por %p74, %p75
      %p77 = scmp.ne.s32.totalorder %s69, %s71
      %p78 = scmp.eq.s32.totalorder %s19, 1
      %p79 = por %p77, %p78
      %p80 = scmp.ne.s32.totalorder %s71, %s72
      %p81 = scmp.eq.s32.totalorder %s19, 0
      %p82 = por %p80, %p81
      %p83 = scmp.ne.s32.totalorder %s71, %s72
      %p84 = scmp.eq.s32.totalorder %s20, 1
      %p85 = por %p83, %p84
      %p87 = scmp.ne.s32.totalorder %s72, %s86
      %p88 = scmp.eq.s32.totalorder %s20, 0
      %p89 = por %p87, %p88
      %s91 = sadd.s32 %s90, 1
      %p94 = scmp.eq.s32.totalorder %s14, 1
      %p95 = scmp.ne.s32.totalorder %s90, %s92
      %p96 = scmp.eq.s32.totalorder %s14, 0
      %p97 = por %p95, %p96
      %p98 = scmp.ne.s32.totalorder %s90, %s92
      %p99 = scmp.eq.s32.totalorder %s19, 1
      %p100 = por %p98, %p99
      %p101 = scmp.ne.s32.totalorder %s92, %s93
      %p102 = scmp.eq.s32.totalorder %s19, 0
      %p103 = por %p101, %p102
      %p104 = scmp.ne.s32.totalorder %s92, %s93
      %p105 = scmp.eq.s32.totalorder %s20, 1
      %p106 = por %p104, %p105
      %p108 = scmp.ne.s32.totalorder %s93, %s107
      %p109 = scmp.eq.s32.totalorder %s20, 0
      %p110 = por %p108, %p109
      %s112 = sadd.s32 %s111, 1
      %p115 = scmp.eq.s32.totalorder %s14, 1
      %p116 = scmp.ne.s32.totalorder %s111, %s113
      %p117 = scmp.eq.s32.totalorder %s14, 0
      %p118 = por %p116, %p117
      %p119 = scmp.ne.s32.totalorder %s111, %s113
      %p120 = scmp.eq.s32.totalorder %s19, 1
      %p121 = por %p119, %p120
      %p122 = scmp.ne.s32.totalorder %s113, %s114
      %p123 = scmp.eq.s32.totalorder %s19, 0
      %p124 = por %p122, %p123
      %p125 = scmp.ne.s32.totalorder %s113, %s114
      %p126 = scmp.eq.s32.totalorder %s20, 1
      %p127 = por %p125, %p126
      %p129 = scmp.ne.s32.totalorder %s114, %s128
      %p130 = scmp.eq.s32.totalorder %s20, 0
      %p131 = por %p129, %p130
      %s133 = sadd.s32 %s132, 1
      %p136 = scmp.eq.s32.totalorder %s14, 1
      %p137 = scmp.ne.s32.totalorder %s132, %s134
      %p138 = scmp.eq.s32.totalorder %s14, 0
      %p139 = por %p137, %p138
      %p140 = scmp.ne.s32.totalorder %s132, %s134
      %p141 = scmp.eq.s32.totalorder %s19, 1
      %p142 = por %p140, %p141
      %p143 = scmp.ne.s32.totalorder %s134, %s135
      %p144 = scmp.eq.s32.totalorder %s19, 0
      %p145 = por %p143, %p144
      %p146 = scmp.ne.s32.totalorder %s134, %s135
      %p147 = scmp.eq.s32.totalorder %s20, 1
      %p148 = por %p146, %p147
      %p150 = scmp.ne.s32.totalorder %s135, %s149
      %p151 = scmp.eq.s32.totalorder %s20, 0
      %p152 = por %p150, %p151
      %s153 = ssub.s32 %s14, %s21
      %p154 = scmp.eq.s32.totalorder %s153, 0
      %s156 = sadd.s32 %s155, 1
      %s157 = scalar_select %p154, %s155, %s156
      %p160 = pneg %p154
      %p161 = scmp.eq.s32.totalorder %s14, 1
      %p162 = por %p160, %p161
      %p163 = scmp.ne.s32.totalorder %s155, %s158
      %p164 = scmp.eq.s32.totalorder %s14, 0
      %p165 = por %p163, %p164
      %p166 = scmp.ne.s32.totalorder %s155, %s158
      %p167 = scmp.eq.s32.totalorder %s19, 1
      %p168 = por %p166, %p167
      %p169 = scmp.ne.s32.totalorder %s158, %s159
      %p170 = scmp.eq.s32.totalorder %s19, 0
      %p171 = por %p169, %p170
      %p172 = scmp.ne.s32.totalorder %s158, %s159
      %p173 = scmp.eq.s32.totalorder %s20, 1
      %p174 = por %p172, %p173
      %p176 = scmp.ne.s32.totalorder %s159, %s175
      %p177 = scmp.eq.s32.totalorder %s20, 0
      %p178 = por %p176, %p177
      %p179 = scmp.le.s32.totalorder 1, %s14
      %p180 = scmp.lt.s32.totalorder %s14, 3
      %p181 = pnand %p179, %p180
      %p182 = pneg %p181
      // Predicated region
      $region9: #{discrete_actor_forward.1} parent=5 // pred_check
        _
      $region10: #{discrete_actor_forward.1} parent=5 // pred_check_branch
        %184 = sbr.rel (%p181) target = $region12
      $region11: #{discrete_actor_forward.1} parent=5 // pred_region
        %s185 = ssub.s32 %s14, 1
        // Predicated region
        $region13: #{discrete_actor_forward.1} parent=11 // pred_check
          %p186 = pneg %p61
        $region14: #{discrete_actor_forward.1} parent=11 // pred_check_branch
          %188 = sbr.rel (%p186) target = $region16
        $region15: #{discrete_actor_forward.1} parent=11 // pred_region
          _
        $region16: #{discrete_actor_forward.1} parent=11 // pred_fallthru
          _
        // Predicated region
        $region17: #{discrete_actor_forward.1} parent=11 // pred_check
          %p189 = pneg %p82
        $region18: #{discrete_actor_forward.1} parent=11 // pred_check_branch
          %191 = sbr.rel (%p189) target = $region20
        $region19: #{discrete_actor_forward.1} parent=11 // pred_region
          _
        $region20: #{discrete_actor_forward.1} parent=11 // pred_fallthru
          _
        // Predicated region
        $region21: #{discrete_actor_forward.1} parent=11 // pred_check
          %p192 = pneg %p103
        $region22: #{discrete_actor_forward.1} parent=11 // pred_check_branch
          %194 = sbr.rel (%p192) target = $region24
        $region23: #{discrete_actor_forward.1} parent=11 // pred_region
          _
        $region24: #{discrete_actor_forward.1} parent=11 // pred_fallthru
          _
        // Predicated region
        $region25: #{discrete_actor_forward.1} parent=11 // pred_check
          %p195 = pneg %p124
        $region26: #{discrete_actor_forward.1} parent=11 // pred_check_branch
          %197 = sbr.rel (%p195) target = $region28
        $region27: #{discrete_actor_forward.1} parent=11 // pred_region
          %s199 = ssub.s32 1024, 1024
          %200 = vsyncadd [#allocation3], %s199
          %s201 = sshll.u32 [#allocation2], 4
          %s202 = int_to_ptr.vmem [resolvable:$true] %s201
          %207 = dma.hbm_to_vmem [thread:$0]  %s4, 1024, %s202, [#allocation3], 128, 128, 8
        $region28: #{discrete_actor_forward.1} parent=11 // pred_fallthru
          _
        // Predicated region
        $region29: #{discrete_actor_forward.1} parent=11 // pred_check
          %p208 = pneg %p145
        $region30: #{discrete_actor_forward.1} parent=11 // pred_check_branch
          %210 = sbr.rel (%p208) target = $region32
        $region31: #{discrete_actor_forward.1} parent=11 // pred_region
          %s212 = ssub.s32 256, 256
          %213 = vsyncadd [#allocation5], %s212
          %s215 = sshll.u32 [#allocation4], 4
          %s216 = int_to_ptr.vmem [resolvable:$true] %s215
          %218 = dma.hbm_to_vmem [thread:$0]  %s5, 256, %s216, [#allocation5]
        $region32: #{discrete_actor_forward.1} parent=11 // pred_fallthru
          _
      $region12: #{discrete_actor_forward.1} parent=5 // pred_fallthru
        _
      %p219 = scmp.lt.s32.totalorder %s14, 2
      // Predicated region
      $region33: #{discrete_actor_forward.1} parent=5 // pred_check
        %p220 = pneg %p219
      $region34: #{discrete_actor_forward.1} parent=5 // pred_check_branch
        %222 = sbr.rel (%p220) target = $region36
      $region35: #{discrete_actor_forward.1} parent=5 // pred_region
        // Predicated region
        $region37: #{discrete_actor_forward.1} parent=35 // pred_check
          %p223 = pneg %p34
        $region38: #{discrete_actor_forward.1} parent=35 // pred_check_branch
          %225 = sbr.rel (%p223) target = $region40
        $region39: #{discrete_actor_forward.1} parent=35 // pred_region
          %s226 = smul.u32 4, %s14
          %p227 = scmp.lt.s32.totalorder %s226, 7
          %s228 = scalar_select %p227, %s226, 7
          %s229 = smul.addr %s228, 8
          %s230 = scalar_lea.vmem %s0, %s229
          %s231 = smul.u32 4, %s14
        $region40: #{discrete_actor_forward.1} parent=35 // pred_fallthru
          _
      $region36: #{discrete_actor_forward.1} parent=5 // pred_fallthru
        _
      %p232 = scmp.le.s32.totalorder 1, %s14
      %p233 = scmp.lt.s32.totalorder %s14, 3
      %p234 = pnand %p232, %p233
      %p235 = pneg %p234
      // Predicated region
      $region41: #{discrete_actor_forward.1} parent=5 // pred_check
        _
      $region42: #{discrete_actor_forward.1} parent=5 // pred_check_branch
        %237 = sbr.rel (%p234) target = $region44
      $region43: #{discrete_actor_forward.1} parent=5 // pred_region
        %s238 = ssub.s32 %s14, 1
        // Predicated region
        $region45: #{discrete_actor_forward.1} parent=43 // pred_check
          %p239 = pneg %p124
        $region46: #{discrete_actor_forward.1} parent=43 // pred_check_branch
          %241 = sbr.rel (%p239) target = $region48
        $region47: #{discrete_actor_forward.1} parent=43 // pred_region
          %242 = dma.done [#allocation3], 1024
        $region48: #{discrete_actor_forward.1} parent=43 // pred_fallthru
          _
        // Predicated region
        $region49: #{discrete_actor_forward.1} parent=43 // pred_check
          %p243 = pneg %p145
        $region50: #{discrete_actor_forward.1} parent=43 // pred_check_branch
          %245 = sbr.rel (%p243) target = $region52
        $region51: #{discrete_actor_forward.1} parent=43 // pred_region
          %246 = dma.done [#allocation5], 256
        $region52: #{discrete_actor_forward.1} parent=43 // pred_fallthru
          _
        %s247 = smul.u32 4, %s19
        %p248 = scmp.lt.s32.totalorder %s247, 7
        %s249 = scalar_select %p248, %s247, 7
        %s250 = smul.addr %s249, 8
        %s251 = scalar_lea.vmem %s0, %s250
        %p252 = pneg %p40
        %p253 = pneg %p37
        %p254 = pneg %p61
        %p255 = pneg %p58
        %p256 = pneg %p82
        %p257 = pneg %p79
        %p258 = pneg %p103
        %p259 = pneg %p100
        %p260 = pneg %p124
        %p261 = pneg %p121
        %p262 = pneg %p145
        %p263 = pneg %p142
        %p264 = pneg %p171
        %p265 = pneg %p168
        %s266 = smul.u32 4, %s19
        %p267 = scmp.lt.s32.totalorder %s266, 7
        %s268 = scalar_select %p267, %s266, 7
        %s269 = smul.addr %s268, 8
        %s270 = scalar_lea.vmem %s6, %s269
        %s271 = smul.u32 4, %s19
        %p272 = scmp.lt.s32.totalorder %s271, 7
        %s273 = scalar_select %p272, %s271, 7
        %s274 = smul.addr %s273, 8
        %s275 = scalar_lea.vmem %s0, %s274
        %s276 = smul.u32 4, %s19
        %s277 = smul.u32 4, %s19
        %p278 = scmp.lt.s32.totalorder %s277, 7
        %s279 = scalar_select %p278, %s277, 7
        %s280 = smul.addr %s279, 8
        %s281 = scalar_lea.vmem %s6, %s280
        %s282 = smul.u32 4, %s19
        %v284 = vld [vmem:[#allocation4] ss:$8 sm:$0x3]
        %v285 = vld [vmem:[#allocation4 + $0x1] ss:$0 sm:$0xff]
        %v286 = vld [vmem:[#allocation4 + $0x2] ss:$0 sm:$0xff]
        %v287 = vld [vmem:[#allocation4 + $0x3] ss:$0 sm:$0xff]
        %v288 = vld [vmem:[#allocation4 + $0x4] ss:$0 sm:$0xff]
        %v289 = vld [vmem:[%s275] sm:$0xff]
        %v290 = vld [vmem:[%s275 + $0x8] sm:$0xff]
        %v291 = vld [vmem:[%s275 + $0x10] sm:$0xff]
        %v292 = vld [vmem:[%s275 + $0x18] sm:$0xff]
        %v293 = vpack.c.bf16 %v290, %v289
        %v294 = vpack.c.bf16 %v292, %v291
        %v295 = vld [vmem:[%s1] sm:$0xff]
        %v296 = vld [vmem:[%s1 + $0x8] sm:$0xff]
        %v297 = vld [vmem:[%s1 + $0x10] sm:$0x33]
        %v299 = vlaneseq
        %v300 = vshrl.u32 %v299, 7
        %v301 = vsub.s32 0, %v300
        %v302 = vrot.slane %v284, %v301
        %v303 = vlaneseq
        %v304 = vshrl.u32 %v303, 7
        %v305 = vsub.s32 1, %v304
        %v306 = vrot.slane %v284, %v305
        %v312 = vunpack.c.l.b16 %v295
        %v313 = vunpack.c.h.b16 %v295
        %v314 = vunpack.c.l.b16 %v296
        %v315 = vunpack.c.h.b16 %v296
        %v316 = vunpack.c.l.b16 %v297
        %v317 = vunpack.c.h.b16 %v297
        %v318 = vpack.c.b16 %v314, %v312
        %v319 = vpack.c.b16 %v315, %v313
        %v320 = vpack.c.b16 %v316, %v316
        %v321 = vpack.c.b16 %v317, %v317
        %vm324 = vcmask 162816
        %v326 = vsel %vm324, %v293, 0
        %v329 = vsel %vm324, %v294, 0
        %vm331 = vcmask 1041408
        %v333 = vsel %vm331, %v320, 0
        %v336 = vsel %vm331, %v321, 0
        %338 = vmatprep.subr.bf16.mxu0 0
        %339 = vmatpush1.bf16.msra.mxu0 0
        %340 = vmatprep.subr.bf16.mxu0 0
        %341 = vmatpush1.bf16.msra.mxu0 0
        %342 = vmatprep.subr.bf16.mxu0 0
        %343 = vmatpush1.bf16.msra.mxu0 0
        %344 = vmatprep.subr.bf16.mxu0 0
        %345 = vmatpush1.bf16.msra.mxu0 0
        %346 = vmatprep.subr.bf16.mxu0 0
        %347 = vmatpush1.bf16.msra.mxu0 0
        %348 = vmatprep.subr.bf16.mxu0 0
        %349 = vmatpush1.bf16.msra.mxu0 0
        %350 = vmatprep.subr.bf16.mxu0 %v336
        %351 = vmatpush1.bf16.msra.mxu0 %v333
        %352 = vmatprep.subr.bf16.mxu0 %v319
        %353 = vmatpush1.bf16.msra.mxu0 %v318
        %354 = vmatprep.subr.bf16.mxu0 0
        %355 = vmatpush2.bf16.msra.mxu0 0
        %356 = vmatprep.subr.bf16.mxu0 0
        %357 = vmatpush2.bf16.msra.mxu0 0
        %358 = vmatprep.subr.bf16.mxu0 0
        %359 = vmatpush2.bf16.msra.mxu0 0
        %360 = vmatprep.subr.bf16.mxu0 0
        %361 = vmatpush2.bf16.msra.mxu0 0
        %362 = vmatprep.subr.bf16.mxu0 0
        %363 = vmatpush2.bf16.msra.mxu0 0
        %364 = vmatprep.subr.bf16.mxu0 0
        %365 = vmatpush2.bf16.msra.mxu0 0
        %366 = vmatprep.subr.bf16.mxu0 0
        %367 = vmatpush2.bf16.msra.mxu0 0
        %368 = vmatprep.subr.bf16.mxu0 0
        %369 = vmatpush2.bf16.msra.mxu0 0
        %370 = vmatprep.mubr.bf16.mxu0 0
        %371 = vmatmul.mubr.bf16.gmra.mxu0 %v326
        %v372 = vpop.f32.mrf.mxu0
        %v373 = vadd.f32 %v302, %v372
        %v374 = vpop.f32.mrf.mxu0
        %v375 = vadd.f32 %v306, %v374
        %v376 = vpop.f32.mrf.mxu0
        %v377 = vadd.f32 %v302, %v376
        %v378 = vpop.f32.mrf.mxu0
        %v379 = vadd.f32 %v306, %v378
        %380 = vmatprep.mubr.bf16.mxu0 0
        %381 = vmatmul.mubr.bf16.gmra.mxu0 %v329
        %v382 = vpop.f32.mrf.mxu0
        %v383 = vadd.f32 %v302, %v382
        %v384 = vpop.f32.mrf.mxu0
        %v385 = vadd.f32 %v306, %v384
        %v386 = vpop.f32.mrf.mxu0
        %v387 = vadd.f32 %v302, %v386
        %v388 = vpop.f32.mrf.mxu0
        %v389 = vadd.f32 %v306, %v388
        %390 = vdwg.mxu0
        %v391 = vmul.f32 %v373, 0.01
        %v392 = vmul.f32 %v375, 0.01
        %v393 = vmul.f32 %v377, 0.01
        %v394 = vmul.f32 %v379, 0.01
        %v395 = vmul.f32 %v383, 0.01
        %v396 = vmul.f32 %v385, 0.01
        %v397 = vmul.f32 %v387, 0.01
        %v398 = vmul.f32 %v389, 0.01
        %v399 = vmax.f32 %v373, %v391
        %v400 = vmax.f32 %v375, %v392
        %v401 = vmax.f32 %v377, %v393
        %v402 = vmax.f32 %v379, %v394
        %v403 = vmax.f32 %v383, %v395
        %v404 = vmax.f32 %v385, %v396
        %v405 = vmax.f32 %v387, %v397
        %v406 = vmax.f32 %v389, %v398
        %v407 = vpack.c.bf16 %v401, %v399
        %v408 = vpack.c.bf16 %v402, %v400
        %v409 = vpack.c.bf16 %v405, %v403
        %v410 = vpack.c.bf16 %v406, %v404
        %v411 = vld [vmem:[%s2] sm:$0xf]
        %v412 = vld [vmem:[%s2 + $0x4] sm:$0xf]
        %v413 = vld [vmem:[%s2 + $0x8] sm:$0xf]
        %v414 = vld [vmem:[%s2 + $0xc] sm:$0xf]
        %v415 = vld [vmem:[%s2 + $0x10] sm:$0xf]
        %v416 = vld [vmem:[%s2 + $0x14] sm:$0xf]
        %v417 = vld [vmem:[%s2 + $0x18] sm:$0xf]
        %v418 = vld [vmem:[%s2 + $0x1c] sm:$0xf]
        %v419 = vld [vmem:[%s2 + $0x20] sm:$0xf]
        %v420 = vld [vmem:[%s2 + $0x24] sm:$0xf]
        %v421 = vld [vmem:[%s2 + $0x28] sm:$0xf]
        %v422 = vld [vmem:[%s2 + $0x2c] sm:$0xf]
        %v423 = vld [vmem:[%s2 + $0x30] sm:$0xf]
        %v424 = vld [vmem:[%s2 + $0x34] sm:$0xf]
        %v425 = vld [vmem:[%s2 + $0x38] sm:$0xf]
        %v426 = vld [vmem:[%s2 + $0x3c] sm:$0xf]
        %v427 = vld [vmem:[%s2 + $0x40] sm:$0xf]
        %v428 = vld [vmem:[%s2 + $0x44] sm:$0xf]
        %v429 = vld [vmem:[%s2 + $0x48] sm:$0xf]
        %v430 = vld [vmem:[%s2 + $0x4c] sm:$0xf]
        %v431 = vld [vmem:[%s2 + $0x50] sm:$0xf]
        %v432 = vld [vmem:[%s2 + $0x54] sm:$0xf]
        %v433 = vld [vmem:[%s2 + $0x58] sm:$0xf]
        %v434 = vld [vmem:[%s2 + $0x5c] sm:$0xf]
        %v435 = vld [vmem:[%s2 + $0x60] sm:$0xf]
        %v436 = vld [vmem:[%s2 + $0x64] sm:$0xf]
        %v437 = vld [vmem:[%s2 + $0x68] sm:$0xf]
        %v438 = vld [vmem:[%s2 + $0x6c] sm:$0xf]
        %v439 = vld [vmem:[%s2 + $0x70] sm:$0xf]
        %v440 = vld [vmem:[%s2 + $0x74] sm:$0xf]
        %v441 = vld [vmem:[%s2 + $0x78] sm:$0xf]
        %v442 = vld [vmem:[%s2 + $0x7c] sm:$0xf]
        %v475 = vunpack.c.l.b16 %v411
        %v476 = vunpack.c.l.b16 %v412
        %v477 = vunpack.c.l.b16 %v413
        %v478 = vunpack.c.l.b16 %v414
        %v479 = vunpack.c.l.b16 %v415
        %v480 = vunpack.c.l.b16 %v416
        %v481 = vunpack.c.l.b16 %v417
        %v482 = vunpack.c.l.b16 %v418
        %v483 = vunpack.c.l.b16 %v419
        %v484 = vunpack.c.l.b16 %v420
        %v485 = vunpack.c.l.b16 %v421
        %v486 = vunpack.c.l.b16 %v422
        %v487 = vunpack.c.l.b16 %v423
        %v488 = vunpack.c.l.b16 %v424
        %v489 = vunpack.c.l.b16 %v425
        %v490 = vunpack.c.l.b16 %v426
        %v491 = vunpack.c.l.b16 %v427
        %v492 = vunpack.c.l.b16 %v428
        %v493 = vunpack.c.l.b16 %v429
        %v494 = vunpack.c.l.b16 %v430
        %v495 = vunpack.c.l.b16 %v431
        %v496 = vunpack.c.l.b16 %v432
        %v497 = vunpack.c.l.b16 %v433
        %v498 = vunpack.c.l.b16 %v434
        %v499 = vunpack.c.l.b16 %v435
        %v500 = vunpack.c.l.b16 %v436
        %v501 = vunpack.c.l.b16 %v437
        %v502 = vunpack.c.l.b16 %v438
        %v503 = vunpack.c.l.b16 %v439
        %v504 = vunpack.c.l.b16 %v440
        %v505 = vunpack.c.l.b16 %v441
        %v506 = vunpack.c.l.b16 %v442
        %v507 = vpack.c.b16 %v476, %v475
        %v508 = vpack.c.b16 %v478, %v477
        %v509 = vpack.c.b16 %v480, %v479
        %v510 = vpack.c.b16 %v482, %v481
        %v511 = vpack.c.b16 %v484, %v483
        %v512 = vpack.c.b16 %v486, %v485
        %v513 = vpack.c.b16 %v488, %v487
        %v514 = vpack.c.b16 %v490, %v489
        %v515 = vpack.c.b16 %v492, %v491
        %v516 = vpack.c.b16 %v494, %v493
        %v517 = vpack.c.b16 %v496, %v495
        %v518 = vpack.c.b16 %v498, %v497
        %v519 = vpack.c.b16 %v500, %v499
        %v520 = vpack.c.b16 %v502, %v501
        %v521 = vpack.c.b16 %v504, %v503
        %v522 = vpack.c.b16 %v506, %v505
        %539 = vmatprep.subr.bf16.mxu0 0
        %540 = vmatpush1.bf16.msra.mxu0 %v514
        %541 = vmatprep.subr.bf16.mxu0 0
        %542 = vmatpush1.bf16.msra.mxu0 %v513
        %543 = vmatprep.subr.bf16.mxu0 0
        %544 = vmatpush1.bf16.msra.mxu0 %v512
        %545 = vmatprep.subr.bf16.mxu0 0
        %546 = vmatpush1.bf16.msra.mxu0 %v511
        %547 = vmatprep.subr.bf16.mxu0 0
        %548 = vmatpush1.bf16.msra.mxu0 %v510
        %549 = vmatprep.subr.bf16.mxu0 0
        %550 = vmatpush1.bf16.msra.mxu0 %v509
        %551 = vmatprep.subr.bf16.mxu0 0
        %552 = vmatpush1.bf16.msra.mxu0 %v508
        %553 = vmatprep.subr.bf16.mxu0 0
        %554 = vmatpush1.bf16.msra.mxu0 %v507
        %555 = vmatprep.subr.bf16.mxu0 0
        %556 = vmatpush2.bf16.msra.mxu0 %v522
        %557 = vmatprep.subr.bf16.mxu0 0
        %558 = vmatpush2.bf16.msra.mxu0 %v521
        %559 = vmatprep.subr.bf16.mxu0 0
        %560 = vmatpush2.bf16.msra.mxu0 %v520
        %561 = vmatprep.subr.bf16.mxu0 0
        %562 = vmatpush2.bf16.msra.mxu0 %v519
        %563 = vmatprep.subr.bf16.mxu0 0
        %564 = vmatpush2.bf16.msra.mxu0 %v518
        %565 = vmatprep.subr.bf16.mxu0 0
        %566 = vmatpush2.bf16.msra.mxu0 %v517
        %567 = vmatprep.subr.bf16.mxu0 0
        %568 = vmatpush2.bf16.msra.mxu0 %v516
        %569 = vmatprep.subr.bf16.mxu0 0
        %570 = vmatpush2.bf16.msra.mxu0 %v515
        %571 = vmatprep.mubr.bf16.mxu0 %v408
        %572 = vmatmul.mubr.bf16.gmra.mxu0 %v407
        %v573 = vpop.f32.mrf.mxu0
        %v574 = vadd.f32 %v285, %v573
        %v575 = vpop.f32.mrf.mxu0
        %v576 = vpop.f32.mrf.mxu0
        %v577 = vadd.f32 %v285, %v576
        %v578 = vpop.f32.mrf.mxu0
        %579 = vmatprep.mubr.bf16.mxu0 %v410
        %580 = vmatmul.mubr.bf16.gmra.mxu0 %v409
        %v581 = vpop.f32.mrf.mxu0
        %v582 = vadd.f32 %v285, %v581
        %v583 = vpop.f32.mrf.mxu0
        %v584 = vpop.f32.mrf.mxu0
        %v585 = vadd.f32 %v285, %v584
        %v586 = vpop.f32.mrf.mxu0
        %587 = vdwg.mxu0
        %v588 = vmul.f32 %v574, 0.01
        %v589 = vmul.f32 %v577, 0.01
        %v590 = vmul.f32 %v582, 0.01
        %v591 = vmul.f32 %v585, 0.01
        %v592 = vmax.f32 %v574, %v588
        %v593 = vmax.f32 %v577, %v589
        %v594 = vmax.f32 %v582, %v590
        %v595 = vmax.f32 %v585, %v591
        %v596 = vpack.c.bf16 %v593, %v592
        %v597 = vpack.c.bf16 %v595, %v594
        %v598 = vld [vmem:[%s3] sm:$0xf]
        %v599 = vld [vmem:[%s3 + $0x4] sm:$0xf]
        %v600 = vld [vmem:[%s3 + $0x8] sm:$0xf]
        %v601 = vld [vmem:[%s3 + $0xc] sm:$0xf]
        %v602 = vld [vmem:[%s3 + $0x10] sm:$0xf]
        %v603 = vld [vmem:[%s3 + $0x14] sm:$0xf]
        %v604 = vld [vmem:[%s3 + $0x18] sm:$0xf]
        %v605 = vld [vmem:[%s3 + $0x1c] sm:$0xf]
        %v606 = vld [vmem:[%s3 + $0x20] sm:$0xf]
        %v607 = vld [vmem:[%s3 + $0x24] sm:$0xf]
        %v608 = vld [vmem:[%s3 + $0x28] sm:$0xf]
        %v609 = vld [vmem:[%s3 + $0x2c] sm:$0xf]
        %v610 = vld [vmem:[%s3 + $0x30] sm:$0xf]
        %v611 = vld [vmem:[%s3 + $0x34] sm:$0xf]
        %v612 = vld [vmem:[%s3 + $0x38] sm:$0xf]
        %v613 = vld [vmem:[%s3 + $0x3c] sm:$0xf]
        %v630 = vunpack.c.l.b16 %v598
        %v631 = vunpack.c.l.b16 %v599
        %v632 = vunpack.c.l.b16 %v600
        %v633 = vunpack.c.l.b16 %v601
        %v634 = vunpack.c.l.b16 %v602
        %v635 = vunpack.c.l.b16 %v603
        %v636 = vunpack.c.l.b16 %v604
        %v637 = vunpack.c.l.b16 %v605
        %v638 = vunpack.c.l.b16 %v606
        %v639 = vunpack.c.l.b16 %v607
        %v640 = vunpack.c.l.b16 %v608
        %v641 = vunpack.c.l.b16 %v609
        %v642 = vunpack.c.l.b16 %v610
        %v643 = vunpack.c.l.b16 %v611
        %v644 = vunpack.c.l.b16 %v612
        %v645 = vunpack.c.l.b16 %v613
        %v646 = vpack.c.b16 %v631, %v630
        %v647 = vpack.c.b16 %v633, %v632
        %v648 = vpack.c.b16 %v635, %v634
        %v649 = vpack.c.b16 %v637, %v636
        %v650 = vpack.c.b16 %v639, %v638
        %v651 = vpack.c.b16 %v641, %v640
        %v652 = vpack.c.b16 %v643, %v642
        %v653 = vpack.c.b16 %v645, %v644
        %662 = vmatprep.subr.bf16.mxu0 0
        %663 = vmatpush1.bf16.msra.mxu0 %v653
        %664 = vmatprep.subr.bf16.mxu0 0
        %665 = vmatpush1.bf16.msra.mxu0 %v652
        %666 = vmatprep.subr.bf16.mxu0 0
        %667 = vmatpush1.bf16.msra.mxu0 %v651
        %668 = vmatprep.subr.bf16.mxu0 0
        %669 = vmatpush1.bf16.msra.mxu0 %v650
        %670 = vmatprep.subr.bf16.mxu0 0
        %671 = vmatpush1.bf16.msra.mxu0 %v649
        %672 = vmatprep.subr.bf16.mxu0 0
        %673 = vmatpush1.bf16.msra.mxu0 %v648
        %674 = vmatprep.subr.bf16.mxu0 0
        %675 = vmatpush1.bf16.msra.mxu0 %v647
        %676 = vmatprep.subr.bf16.mxu0 0
        %677 = vmatpush1.bf16.msra.mxu0 %v646
        %678 = vmatprep.subr.bf16.mxu0 0
        %679 = vmatpush2.bf16.msra.mxu0 0
        %680 = vmatprep.subr.bf16.mxu0 0
        %681 = vmatpush2.bf16.msra.mxu0 0
        %682 = vmatprep.subr.bf16.mxu0 0
        %683 = vmatpush2.bf16.msra.mxu0 0
        %684 = vmatprep.subr.bf16.mxu0 0
        %685 = vmatpush2.bf16.msra.mxu0 0
        %686 = vmatprep.subr.bf16.mxu0 0
        %687 = vmatpush2.bf16.msra.mxu0 0
        %688 = vmatprep.subr.bf16.mxu0 0
        %689 = vmatpush2.bf16.msra.mxu0 0
        %690 = vmatprep.subr.bf16.mxu0 0
        %691 = vmatpush2.bf16.msra.mxu0 0
        %692 = vmatprep.subr.bf16.mxu0 0
        %693 = vmatpush2.bf16.msra.mxu0 0
        %694 = vmatprep.mubr.bf16.mxu0 0
        %695 = vmatmul.mubr.bf16.gmra.mxu0 %v596
        %v696 = vpop.f32.mrf.mxu0
        %v697 = vadd.f32 %v286, %v696
        %v698 = vpop.f32.mrf.mxu0
        %v699 = vpop.f32.mrf.mxu0
        %v700 = vadd.f32 %v286, %v699
        %v701 = vpop.f32.mrf.mxu0
        %702 = vmatprep.mubr.bf16.mxu0 0
        %703 = vmatmul.mubr.bf16.gmra.mxu0 %v597
        %v704 = vpop.f32.mrf.mxu0
        %v705 = vadd.f32 %v286, %v704
        %v706 = vpop.f32.mrf.mxu0
        %v707 = vpop.f32.mrf.mxu0
        %v708 = vadd.f32 %v286, %v707
        %v709 = vpop.f32.mrf.mxu0
        %710 = vdwg.mxu0
        %v711 = vmul.f32 %v697, 0.01
        %v712 = vmul.f32 %v700, 0.01
        %v713 = vmul.f32 %v705, 0.01
        %v714 = vmul.f32 %v708, 0.01
        %v715 = vmax.f32 %v697, %v711
        %v716 = vmax.f32 %v700, %v712
        %v717 = vmax.f32 %v705, %v713
        %v718 = vmax.f32 %v708, %v714
        %v719 = vld [vmem:[#allocation2] sm:$0xff]
        %v720 = vld [vmem:[#allocation2 + $0x8] sm:$0xff]
        %v721 = vld [vmem:[#allocation2 + $0x10] sm:$0xff]
        %v722 = vld [vmem:[#allocation2 + $0x18] sm:$0xff]
        %v723 = vld [vmem:[#allocation2 + $0x20] sm:$0xff]
        %v724 = vld [vmem:[#allocation2 + $0x28] sm:$0xff]
        %v725 = vld [vmem:[#allocation2 + $0x30] sm:$0xff]
        %v726 = vld [vmem:[#allocation2 + $0x38] sm:$0xff]
        %vm727 = vcmask 523264
        %v729 = vsel %vm727, %v715, 0
        %v732 = vsel %vm727, %v716, 0
        %v735 = vsel %vm727, %v717, 0
        %v738 = vsel %vm727, %v718, 0
        %740 = vmatprep.subr.mxu0 0.0
        %741 = vmatpush1.msra.mxu0 0.0
        %742 = vmatprep.subr.mxu0 0.0
        %743 = vmatpush1.msra.mxu0 0.0
        %744 = vmatprep.subr.mxu0 0.0
        %745 = vmatpush1.msra.mxu0 0.0
        %746 = vmatprep.subr.mxu0 0.0
        %747 = vmatpush1.msra.mxu0 0.0
        %748 = vmatprep.subr.mxu0 0.0
        %749 = vmatpush1.msra.mxu0 0.0
        %750 = vmatprep.subr.mxu0 0.0
        %751 = vmatpush1.msra.mxu0 0.0
        %752 = vmatprep.subr.mxu0 0.0
        %753 = vmatpush1.msra.mxu0 0.0
        %754 = vmatprep.subr.mxu0 0.0
        %755 = vmatpush1.msra.mxu0 0.0
        %756 = vmatprep.subr.mxu0 0.0
        %757 = vmatpush1.msra.mxu0 %v726
        %758 = vmatprep.subr.mxu0 0.0
        %759 = vmatpush1.msra.mxu0 %v725
        %760 = vmatprep.subr.mxu0 0.0
        %761 = vmatpush1.msra.mxu0 %v724
        %762 = vmatprep.subr.mxu0 0.0
        %763 = vmatpush1.msra.mxu0 %v723
        %764 = vmatprep.subr.mxu0 0.0
        %765 = vmatpush1.msra.mxu0 %v722
        %766 = vmatprep.subr.mxu0 0.0
        %767 = vmatpush1.msra.mxu0 %v721
        %768 = vmatprep.subr.mxu0 0.0
        %769 = vmatpush1.msra.mxu0 %v720
        %770 = vmatprep.subr.mxu0 0.0
        %771 = vmatpush1.msra.mxu0 %v719
        %772 = vmatprep.subr.mxu0 0.0
        %773 = vmatpush2.msra.mxu0 0.0
        %774 = vmatprep.subr.mxu0 0.0
        %775 = vmatpush2.msra.mxu0 0.0
        %776 = vmatprep.subr.mxu0 0.0
        %777 = vmatpush2.msra.mxu0 0.0
        %778 = vmatprep.subr.mxu0 0.0
        %779 = vmatpush2.msra.mxu0 0.0
        %780 = vmatprep.subr.mxu0 0.0
        %781 = vmatpush2.msra.mxu0 0.0
        %782 = vmatprep.subr.mxu0 0.0
        %783 = vmatpush2.msra.mxu0 0.0
        %784 = vmatprep.subr.mxu0 0.0
        %785 = vmatpush2.msra.mxu0 0.0
        %786 = vmatprep.subr.mxu0 0.0
        %787 = vmatpush2.msra.mxu0 0.0
        %788 = vmatprep.subr.mxu0 0.0
        %789 = vmatpush2.msra.mxu0 0.0
        %790 = vmatprep.subr.mxu0 0.0
        %791 = vmatpush2.msra.mxu0 0.0
        %792 = vmatprep.subr.mxu0 0.0
        %793 = vmatpush2.msra.mxu0 0.0
        %794 = vmatprep.subr.mxu0 0.0
        %795 = vmatpush2.msra.mxu0 0.0
        %796 = vmatprep.subr.mxu0 0.0
        %797 = vmatpush2.msra.mxu0 0.0
        %798 = vmatprep.subr.mxu0 0.0
        %799 = vmatpush2.msra.mxu0 0.0
        %800 = vmatprep.subr.mxu0 0.0
        %801 = vmatpush2.msra.mxu0 0.0
        %802 = vmatprep.subr.mxu0 0.0
        %803 = vmatpush2.msra.mxu0 0.0
        %804 = vmatprep.mubr.f32.mxu0 0.0
        %805 = vmatmul.mubr.f32.gmra.mxu0 %v729
        %v806 = vpop.f32.mrf.mxu0
        %v807 = vadd.f32 %v287, %v806
        %v808 = vpop.f32.mrf.mxu0
        %809 = vmatprep.mubr.f32.mxu0 0.0
        %810 = vmatmul.mubr.f32.gmra.mxu0 %v732
        %v811 = vpop.f32.mrf.mxu0
        %v812 = vadd.f32 %v287, %v811
        %v813 = vpop.f32.mrf.mxu0
        %814 = vmatprep.mubr.f32.mxu0 0.0
        %815 = vmatmul.mubr.f32.gmra.mxu0 %v735
        %v816 = vpop.f32.mrf.mxu0
        %v817 = vadd.f32 %v287, %v816
        %v818 = vpop.f32.mrf.mxu0
        %819 = vmatprep.mubr.f32.mxu0 0.0
        %820 = vmatmul.mubr.f32.gmra.mxu0 %v738
        %v821 = vpop.f32.mrf.mxu0
        %v822 = vadd.f32 %v287, %v821
        %v823 = vpop.f32.mrf.mxu0
        %824 = vdwg.mxu0
        %825 = vmax.xlane.f32.xlu0 %v807
        %v826 = vpop.xlane.xlu0 %825
        %827 = vmax.xlane.f32.xlu0 %v812
        %v828 = vpop.xlane.xlu0 %827
        %829 = vmax.xlane.f32.xlu0 %v817
        %v830 = vpop.xlane.xlu0 %829
        %831 = vmax.xlane.f32.xlu0 %v822
        %v832 = vpop.xlane.xlu0 %831
        %v833 = vsub.f32 %v807, %v826
        %v834 = vsub.f32 %v812, %v828
        %v835 = vsub.f32 %v817, %v830
        %v836 = vsub.f32 %v822, %v832
        %v837 = vmul.f32 %v833, 1.442695
        %v838 = vpow.pop %v837
        %v839 = vmul.f32 %v834, 1.442695
        %v840 = vpow.pop %v839
        %v841 = vmul.f32 %v835, 1.442695
        %v842 = vpow.pop %v841
        %v843 = vmul.f32 %v836, 1.442695
        %v844 = vpow.pop %v843
        %845 = vadd.xlane.f32.xlu0 %v838
        %v846 = vpop.xlane.xlu0 %845
        %847 = vadd.xlane.f32.xlu0 %v840
        %v848 = vpop.xlane.xlu0 %847
        %849 = vadd.xlane.f32.xlu0 %v842
        %v850 = vpop.xlane.xlu0 %849
        %851 = vadd.xlane.f32.xlu0 %v844
        %v852 = vpop.xlane.xlu0 %851
        %v853 = vlog2.pop %v846
        %v854 = vmul.f32 %v853, 0.6931472
        %v855 = vlog2.pop %v848
        %v856 = vmul.f32 %v855, 0.6931472
        %v857 = vlog2.pop %v850
        %v858 = vmul.f32 %v857, 0.6931472
        %v859 = vlog2.pop %v852
        %v860 = vmul.f32 %v859, 0.6931472
        %v861 = vadd.f32 %v826, %v854
        %v862 = vadd.f32 %v828, %v856
        %v863 = vadd.f32 %v830, %v858
        %v864 = vadd.f32 %v832, %v860
        %v865 = vsub.f32 %v807, %v861
        %v866 = vsub.f32 %v812, %v862
        %v867 = vsub.f32 %v817, %v863
        %v868 = vsub.f32 %v822, %v864
        %vm869 = vcmp.ne.f32.partialorder %v288, 0.0
        %v870 = vsel %vm869, 1, 0
        %vm871 = vcmp.eq.s32.totalorder %v870, 1
        %v872 = vsel %vm871, %v861, %v865
        %v873 = vsel %vm871, %v862, %v866
        %v874 = vsel %vm871, %v863, %v867
        %v875 = vsel %vm871, %v864, %v868
        %876 = vst [vmem:[%s281] sm:$0xff] %v872
        %877 = vst [vmem:[%s281 + $0x8] sm:$0xff] %v873
        %878 = vst [vmem:[%s281 + $0x10] sm:$0xff] %v874
        %879 = vst [vmem:[%s281 + $0x18] sm:$0xff] %v875
        %s880 = smul.u32 4, %s19
        %p881 = scmp.lt.s32.totalorder %s880, 7
        %s882 = scalar_select %p881, %s880, 7
        %s883 = smul.addr %s882, 8
        %s884 = scalar_lea.vmem %s6, %s883
        // Predicated region
        $region53: #{discrete_actor_forward.1} parent=43 // pred_check
          %p885 = pneg %p168
        $region54: #{discrete_actor_forward.1} parent=43 // pred_check_branch
          %887 = sbr.rel (%p885) target = $region56
        $region55: #{discrete_actor_forward.1} parent=43 // pred_region
          %s888 = smul.u32 4, %s19
        $region56: #{discrete_actor_forward.1} parent=43 // pred_fallthru
          _
      $region44: #{discrete_actor_forward.1} parent=5 // pred_fallthru
        _
      %p889 = scmp.le.s32.totalorder 2, %s14
      // Predicated region
      $region57: #{discrete_actor_forward.1} parent=5 // pred_check
        %p890 = pneg %p889
      $region58: #{discrete_actor_forward.1} parent=5 // pred_check_branch
        %892 = sbr.rel (%p890) target = $region60
      $region59: #{discrete_actor_forward.1} parent=5 // pred_region
        %s893 = ssub.s32 %s14, 2
        // Predicated region
        $region61: #{discrete_actor_forward.1} parent=59 // pred_check
          %p894 = pneg %p174
        $region62: #{discrete_actor_forward.1} parent=59 // pred_check_branch
          %896 = sbr.rel (%p894) target = $region64
        $region63: #{discrete_actor_forward.1} parent=59 // pred_region
          %s897 = smul.u32 4, %s20
          %p898 = scmp.lt.s32.totalorder %s897, 7
          %s899 = scalar_select %p898, %s897, 7
          %s900 = smul.addr %s899, 8
          %s901 = scalar_lea.vmem %s6, %s900
        $region64: #{discrete_actor_forward.1} parent=59 // pred_fallthru
          _
      $region60: #{discrete_actor_forward.1} parent=5 // pred_fallthru
        _
    $region6: #{discrete_actor_forward.1} parent=1 // loop_footer
      %s18 = sadd.s32 1, %s14
    $region7: #{discrete_actor_forward.1} parent=1 // loop_footer_branch
      %13 = sbr.rel target = $region3
    $region8: #{discrete_actor_forward.1} parent=1 // loop_exit
      _
    %902 = vsyncpa [#allocation3], 1
    %s903 = scalar_lea.sflag [#allocation3], 1
    %904 = vsyncpa %s903, 1
    %905 = vsyncpa [#allocation5], 1

</llo_original>
